<compile_context>
chip_gen: v7x
topology: tpu7x:2x2x1
jax: 0.10.0
libtpu: 0.0.40
codegen_flags: <defaults>
</compile_context>

<pallas_src>
import functools
import math

import jax
import jax.numpy as jnp
from jax.experimental import pallas as pl
from jax.experimental.pallas import tpu as pltpu

EPS = 1e-6
# Explicit scoped-VMEM request: raises v5e's 16 MiB default, matches the
# v6e/v7x default.  Tiles below are sized to stay far under this (also safe on
# v7x's 64 MiB physical VMEM).
VMEM_LIMIT_BYTES = 32 * 1024 * 1024


# ---------------------------------------------------------------------------
# LayerNormalization
# ---------------------------------------------------------------------------
def _layernorm_kernel(x_ref, alpha_ref, bias_ref, o_ref):
    # x_ref: (ROW_TILE, F)   alpha_ref/bias_ref: (1, F)   o_ref: (ROW_TILE, F)
    x = x_ref[...].astype(jnp.float32)
    f = x.shape[-1]

    # One pass over the row: two independent cross-lane reductions.
    s = jnp.sum(x, axis=-1, keepdims=True)
    sq = jnp.sum(x * x, axis=-1, keepdims=True)
    mean = s * (1.0 / f)
    # torch.std(..., unbiased=True): divide by (N - 1)
    var = (sq - f * mean * mean) * (1.0 / (f - 1))
    var = jnp.maximum(var, 0.0)  # guard tiny negative from cancellation
    std = jnp.sqrt(var)

    denom = std + EPS
    inv = pl.reciprocal(denom, approx=True)      # EUP vrcp (free bundle slot)
    inv = inv * (2.0 - denom * inv)              # one Newton step -> f32 accuracy

    alpha = alpha_ref[...].astype(jnp.float32)
    bias = bias_ref[...].astype(jnp.float32)
    o_ref[...] = ((x - mean) * inv * alpha + bias).astype(o_ref.dtype)


def layer_norm(x, alpha, bias, *, row_tile=256):
    """LayerNormalization.forward over the last axis of x."""
    orig_shape = x.shape
    F = orig_shape[-1]
    rows = x.size // F
    x2d = x.reshape(rows, F)

    rt = min(row_tile, rows)
    n_blocks = pl.cdiv(rows, rt)
    padded = n_blocks * rt
    if padded != rows:  # pad rows so the grid divides evenly; sliced off below
        x2d = jnp.pad(x2d, ((0, padded - rows), (0, 0)))

    out2d = pl.pallas_call(
        _layernorm_kernel,
        out_shape=jax.ShapeDtypeStruct((padded, F), x.dtype),
        grid_spec=pltpu.PrefetchScalarGridSpec(
            num_scalar_prefetch=0,
            grid=(n_blocks,),
            in_specs=[
                pl.BlockSpec((rt, F), lambda i: (i, 0)),
                pl.BlockSpec((1, F), lambda i: (0, 0)),
                pl.BlockSpec((1, F), lambda i: (0, 0)),
            ],
            out_specs=pl.BlockSpec((rt, F), lambda i: (i, 0)),
        ),
        compiler_params=pltpu.CompilerParams(
            dimension_semantics=("parallel",),
            vmem_limit_bytes=VMEM_LIMIT_BYTES,
        ),
    )(x2d, alpha.reshape(1, F), bias.reshape(1, F))

    if padded != rows:
        out2d = out2d[:rows]
    return out2d.reshape(orig_shape)


# ---------------------------------------------------------------------------
# Fused linear: out = [relu](x @ w + bias) [+ residual]
# ---------------------------------------------------------------------------
def _make_linear_kernel(has_bias, has_residual, activation):
    def kernel(*refs):
        idx = 0
        x_ref = refs[idx]; idx += 1
        w_ref = refs[idx]; idx += 1
        b_ref = None
        r_ref = None
        if has_bias:
            b_ref = refs[idx]; idx += 1
        if has_residual:
            r_ref = refs[idx]; idx += 1
        o_ref = refs[idx]; idx += 1
        acc_ref = refs[idx]

        k = pl.program_id(2)

        @pl.when(k == 0)
        def _():
            acc_ref[...] = jnp.zeros_like(acc_ref)

        acc_ref[...] += jnp.dot(
            x_ref[...], w_ref[...], preferred_element_type=jnp.float32
        )

        @pl.when(k == pl.num_programs(2) - 1)
        def _():
            out = acc_ref[...]
            if has_bias:
                out = out + b_ref[...].astype(jnp.float32)
            if activation == "relu":
                out = jnp.maximum(out, 0.0)
            if has_residual:
                out = out + r_ref[...].astype(jnp.float32)
            o_ref[...] = out.astype(o_ref.dtype)

    return kernel


def _pick_tile(dim, cap, align):
    """Largest tile <= cap that divides dim and is a multiple of `align`
    (falls back to the full dim, which is always a legal block)."""
    if dim <= cap:
        return dim
    t = (cap // align) * align
    while t >= align:
        if dim % t == 0:
            return t
        t -= align
    return dim


def linear(x2d, w, *, bias=None, residual=None, activation=None,
           tm_cap=256, tn_cap=256, tk_cap=512):
    """x2d: [M, K], w: [K, N] (already transposed from torch's [out, in])."""
    M, K = x2d.shape
    Kw, N = w.shape
    assert K == Kw

    tm = _pick_tile(M, tm_cap, 8)
    tn = _pick_tile(N, tn_cap, 128)
    tk = _pick_tile(K, tk_cap, 128)
    grid = (M // tm, N // tn, K // tk)

    in_specs = [
        pl.BlockSpec((tm, tk), lambda i, j, kk: (i, kk)),
        pl.BlockSpec((tk, tn), lambda i, j, kk: (kk, j)),
    ]
    args = [x2d, w]
    if bias is not None:
        in_specs.append(pl.BlockSpec((1, tn), lambda i, j, kk: (0, j)))
        args.append(bias.reshape(1, N))
    if residual is not None:
        in_specs.append(pl.BlockSpec((tm, tn), lambda i, j, kk: (i, j)))
        args.append(residual)

    kernel = _make_linear_kernel(bias is not None, residual is not None, activation)

    return pl.pallas_call(
        kernel,
        out_shape=jax.ShapeDtypeStruct((M, N), x2d.dtype),
        grid_spec=pltpu.PrefetchScalarGridSpec(
            num_scalar_prefetch=0,
            grid=grid,
            in_specs=in_specs,
            out_specs=pl.BlockSpec((tm, tn), lambda i, j, kk: (i, j)),
            scratch_shapes=[pltpu.VMEM((tm, tn), jnp.float32)],
        ),
        compiler_params=pltpu.CompilerParams(
            dimension_semantics=("parallel", "parallel", "arbitrary"),
            vmem_limit_bytes=VMEM_LIMIT_BYTES,
        ),
    )(*args)


# ---------------------------------------------------------------------------
# Masked softmax attention, one (batch, head) tile per grid step
# ---------------------------------------------------------------------------
def _attention_kernel(q_ref, k_ref, v_ref, mask_ref, o_ref, *, scale):
    q = q_ref[...].astype(jnp.float32)   # (Sq, dk)
    k = k_ref[...].astype(jnp.float32)   # (Sk, dk)
    v = v_ref[...].astype(jnp.float32)   # (Sk, dk)
    m = mask_ref[...]                    # (Sq, Sk)

    scores = jax.lax.dot_general(
        q, k, dimension_numbers=(((1,), (1,)), ((), ())),
        preferred_element_type=jnp.float32) * scale
    scores = jnp.where(m == 0, -1e9, scores)
    scores = scores - jnp.max(scores, axis=-1, keepdims=True)
    p = jnp.exp(scores)
    denom = jnp.sum(p, axis=-1, keepdims=True)
    p = p * pl.reciprocal(denom, approx=False)
    out = jnp.dot(p, v, preferred_element_type=jnp.float32)
    o_ref[...] = out.astype(o_ref.dtype)


def _attention(qh, kh, vh, mask3):
    """qh/kh/vh: [B, H, S, dk], mask3: [B, Sq, Sk] -> [B, H, Sq, dk]."""
    B, H, Sq, dk = qh.shape
    Sk = kh.shape[2]
    kernel = functools.partial(_attention_kernel, scale=1.0 / math.sqrt(dk))

    return pl.pallas_call(
        kernel,
        out_shape=jax.ShapeDtypeStruct((B, H, Sq, dk), qh.dtype),
        grid_spec=pltpu.PrefetchScalarGridSpec(
            num_scalar_prefetch=0,
            grid=(B, H),
            in_specs=[
                pl.BlockSpec((None, None, Sq, dk), lambda b, h: (b, h, 0, 0)),
                pl.BlockSpec((None, None, Sk, dk), lambda b, h: (b, h, 0, 0)),
                pl.BlockSpec((None, None, Sk, dk), lambda b, h: (b, h, 0, 0)),
                pl.BlockSpec((None, Sq, Sk), lambda b, h: (b, 0, 0)),
            ],
            out_specs=pl.BlockSpec((None, None, Sq, dk), lambda b, h: (b, h, 0, 0)),
        ),
        compiler_params=pltpu.CompilerParams(
            dimension_semantics=("parallel", "parallel"),
            vmem_limit_bytes=VMEM_LIMIT_BYTES,
        ),
    )(qh, kh, vh, mask3)


# ---------------------------------------------------------------------------
# Module-level forwards
# ---------------------------------------------------------------------------
def multi_head_attention(q, k, v, mask3, wq, wk, wv, wo, h, *, residual):
    """MultiHeadAttentionBlock.forward with the ResidualConnection add fused
    into the output projection (w_o). Dropout is identity (eval mode)."""
    B, Sq, D = q.shape
    Sk = k.shape[1]
    dk = D // h

    q2 = linear(q.reshape(B * Sq, D), wq.T)
    k2 = linear(k.reshape(B * Sk, D), wk.T)
    v2 = linear(v.reshape(B * Sk, D), wv.T)

    qh = q2.reshape(B, Sq, h, dk).transpose(0, 2, 1, 3)
    kh = k2.reshape(B, Sk, h, dk).transpose(0, 2, 1, 3)
    vh = v2.reshape(B, Sk, h, dk).transpose(0, 2, 1, 3)

    av = _attention(qh, kh, vh, mask3)                 # [B, H, Sq, dk]
    av = av.transpose(0, 2, 1, 3).reshape(B * Sq, D)   # concat heads

    out = linear(av, wo.T, residual=residual.reshape(B * Sq, D))
    return out.reshape(B, Sq, D)


def feed_forward(x, w1, b1, w2, b2, *, residual):
    """FeedForwardBlock.forward (linear -> relu -> [dropout=id] -> linear) with
    the ResidualConnection add fused into linear_2."""
    B, S, D = x.shape
    x2 = x.reshape(B * S, D)
    hid = linear(x2, w1.T, bias=b1, activation="relu")
    out = linear(hid, w2.T, bias=b2, residual=residual.reshape(B * S, D))
    return out.reshape(B, S, D)


def _mask_to_3d(mask, B, Sq, Sk):
    m = mask
    if m.ndim == 4:      # [B or 1, 1, Sq, Sk]
        m = m[:, 0]
    elif m.ndim == 2:    # [Sq, Sk]
        m = m[None]
    return jnp.broadcast_to(m, (B, Sq, Sk)).astype(jnp.float32)


def decoder_block_forward(x, encoder_output, src_mask, tgt_mask, params):
    """DecoderBlock.forward (pre-norm, eval-mode dropout = identity)."""
    p = params
    B, S, D = x.shape
    S_src = encoder_output.shape[1]
    tgt3 = _mask_to_3d(tgt_mask, B, S, S)
    src3 = _mask_to_3d(src_mask, B, S, S_src)

    # Residual connection 0: self-attention
    xn = layer_norm(x, p["norm0_alpha"], p["norm0_bias"])
    x = multi_head_attention(xn, xn, xn, tgt3,
                             p["self_wq"], p["self_wk"], p["self_wv"], p["self_wo"],
                             p["h"], residual=x)

    # Residual connection 1: cross-attention
    xn = layer_norm(x, p["norm1_alpha"], p["norm1_bias"])
    x = multi_head_attention(xn, encoder_output, encoder_output, src3,
                             p["cross_wq"], p["cross_wk"], p["cross_wv"], p["cross_wo"],
                             p["h"], residual=x)

    # Residual connection 2: feed-forward
    xn = layer_norm(x, p["norm2_alpha"], p["norm2_bias"])
    x = feed_forward(xn, p["ff_w1"], p["ff_b1"], p["ff_w2"], p["ff_b2"], residual=x)
    return x


# ---------------------------------------------------------------------------
# Pure-JAX reference (mirrors the PyTorch module, eval-mode dropout)
# ---------------------------------------------------------------------------
def _ref_layer_norm(x, alpha, bias):
    mean = jnp.mean(x, axis=-1, keepdims=True)
    std = jnp.std(x, axis=-1, keepdims=True, ddof=1)
    return alpha * (x - mean) / (std + EPS) + bias


def _ref_mha(q, k, v, mask4, wq, wk, wv, wo, h):
    B, Sq, D = q.shape
    Sk = k.shape[1]
    dk = D // h
    Q = (q @ wq.T).reshape(B, Sq, h, dk).transpose(0, 2, 1, 3)
    K = (k @ wk.T).reshape(B, Sk, h, dk).transpose(0, 2, 1, 3)
    V = (v @ wv.T).reshape(B, Sk, h, dk).transpose(0, 2, 1, 3)
    scores = (Q @ K.transpose(0, 1, 3, 2)) / math.sqrt(dk)
    scores = jnp.where(mask4 == 0, -1e9, scores)
    attn = jax.nn.softmax(scores, axis=-1)
    av = (attn @ V).transpose(0, 2, 1, 3).reshape(B, Sq, D)
    return av @ wo.T


def _ref_decoder_block(x, enc, src_mask, tgt_mask, p):
    xn = _ref_layer_norm(x, p["norm0_alpha"], p["norm0_bias"])
    x = x + _ref_mha(xn, xn, xn, tgt_mask,
                     p["self_wq"], p["self_wk"], p["self_wv"], p["self_wo"], p["h"])
    xn = _ref_layer_norm(x, p["norm1_alpha"], p["norm1_bias"])
    x = x + _ref_mha(xn, enc, enc, src_mask,
                     p["cross_wq"], p["cross_wk"], p["cross_wv"], p["cross_wo"], p["h"])
    xn = _ref_layer_norm(x, p["norm2_alpha"], p["norm2_bias"])
    ff = jnp.maximum(xn @ p["ff_w1"].T + p["ff_b1"], 0.0) @ p["ff_w2"].T + p["ff_b2"]
    return x + ff


# ---------------------------------------------------------------------------
if __name__ == "__main__":
    key = jax.random.PRNGKey(0)
    B, S, S_SRC = 2, 16, 16
    D, H, D_FF = 128, 4, 256   # lane-dense widths (multiples of 128 where it matters)
    WSCALE = 0.05

    ks = jax.random.split(key, 14)
    params = {
        "h": H,
        "norm0_alpha": jnp.ones((D,), jnp.float32), "norm0_bias": jnp.zeros((D,), jnp.float32),
        "norm1_alpha": jnp.ones((D,), jnp.float32), "norm1_bias": jnp.zeros((D,), jnp.float32),
        "norm2_alpha": jnp.ones((D,), jnp.float32), "norm2_bias": jnp.zeros((D,), jnp.float32),
        # weights kept in torch layout [out_features, in_features]
        "self_wq": WSCALE * jax.random.normal(ks[0], (D, D), jnp.float32),
        "self_wk": WSCALE * jax.random.normal(ks[1], (D, D), jnp.float32),
        "self_wv": WSCALE * jax.random.normal(ks[2], (D, D), jnp.float32),
        "self_wo": WSCALE * jax.random.normal(ks[3], (D, D), jnp.float32),
        "cross_wq": WSCALE * jax.random.normal(ks[4], (D, D), jnp.float32),
        "cross_wk": WSCALE * jax.random.normal(ks[5], (D, D), jnp.float32),
        "cross_wv": WSCALE * jax.random.normal(ks[6], (D, D), jnp.float32),
        "cross_wo": WSCALE * jax.random.normal(ks[7], (D, D), jnp.float32),
        "ff_w1": WSCALE * jax.random.normal(ks[8], (D_FF, D), jnp.float32),
        "ff_b1": WSCALE * jax.random.normal(ks[9], (D_FF,), jnp.float32),
        "ff_w2": WSCALE * jax.random.normal(ks[10], (D, D_FF), jnp.float32),
        "ff_b2": WSCALE * jax.random.normal(ks[11], (D,), jnp.float32),
    }

    x = jax.random.normal(ks[12], (B, S, D), jnp.float32)
    enc = jax.random.normal(ks[13], (B, S_SRC, D), jnp.float32)
    tgt_mask = jnp.broadcast_to(
        jnp.tril(jnp.ones((S, S), jnp.float32))[None, None], (B, 1, S, S))
    src_mask = jnp.ones((B, 1, S, S_SRC), jnp.float32)

    out = decoder_block_forward(x, enc, src_mask, tgt_mask, params)
    out = jax.block_until_ready(out)

    ref = _ref_decoder_block(x, enc, src_mask, tgt_mask, params)
    assert out.shape == (B, S, D)
    max_diff = float(jnp.max(jnp.abs(out - ref)))
    assert jnp.allclose(out, ref, atol=1e-2, rtol=1e-2), f"mismatch vs ref (max diff {max_diff})"

    print("KERNEL_OK")
</pallas_src>

<mosaic_0001>
module attributes {stable_mosaic.version = 11 : i64} {
  func.func @_layernorm_kernel(%arg0: i32, %arg1: memref<32x128xf32, #tpu.memory_space<vmem>>, %arg2: memref<1x128xf32, #tpu.memory_space<vmem>>, %arg3: memref<1x128xf32, #tpu.memory_space<vmem>>, %arg4: memref<32x128xf32, #tpu.memory_space<vmem>>) attributes {dimension_semantics = [#tpu.dimension_semantics<parallel>], iteration_bounds = array<i64: 1>, scalar_prefetch = 0 : i64, scratch_operands = 0 : i64, tpu.core_type = #tpu.core_type<tc>, window_params = [{transform_indices = @transform_0, window_bounds = array<i64: 32, 128>}, {pipeline_mode = #tpu.pipeline_mode<synchronous>, transform_indices = @transform_1, window_bounds = array<i64: 1, 128>}, {pipeline_mode = #tpu.pipeline_mode<synchronous>, transform_indices = @transform_2, window_bounds = array<i64: 1, 128>}, {transform_indices = @transform_3, window_bounds = array<i64: 32, 128>}]} {
    %c0 = arith.constant 0 : index
    %c0_0 = arith.constant 0 : index
    %0 = vector.load %arg1[%c0, %c0_0] : memref<32x128xf32, #tpu.memory_space<vmem>>, vector<32x128xf32>
    %cst = arith.constant dense<0.000000e+00> : vector<32xf32>
    %1 = vector.multi_reduction <add>, %0, %cst [1] : vector<32x128xf32> to vector<32xf32>
    %2 = vector.shape_cast %1 : vector<32xf32> to vector<32x1xf32>
    %3 = arith.mulf %0, %0 : vector<32x128xf32>
    %cst_1 = arith.constant dense<0.000000e+00> : vector<32xf32>
    %4 = vector.multi_reduction <add>, %3, %cst_1 [1] : vector<32x128xf32> to vector<32xf32>
    %5 = vector.shape_cast %4 : vector<32xf32> to vector<32x1xf32>
    %cst_2 = arith.constant 7.812500e-03 : f32
    %6 = vector.broadcast %cst_2 : f32 to vector<32x1xf32>
    %7 = arith.mulf %2, %6 : vector<32x1xf32>
    %cst_3 = arith.constant 1.280000e+02 : f32
    %8 = vector.broadcast %cst_3 : f32 to vector<32x1xf32>
    %9 = arith.mulf %8, %7 : vector<32x1xf32>
    %10 = arith.mulf %9, %7 : vector<32x1xf32>
    %11 = arith.subf %5, %10 : vector<32x1xf32>
    %cst_4 = arith.constant 0.00787401571 : f32
    %12 = vector.broadcast %cst_4 : f32 to vector<32x1xf32>
    %13 = arith.mulf %11, %12 : vector<32x1xf32>
    %cst_5 = arith.constant 0.000000e+00 : f32
    %14 = vector.broadcast %cst_5 : f32 to vector<32x1xf32>
    %15 = arith.maximumf %13, %14 : vector<32x1xf32>
    %16 = math.sqrt %15 : vector<32x1xf32>
    %cst_6 = arith.constant 9.99999997E-7 : f32
    %17 = vector.broadcast %cst_6 : f32 to vector<32x1xf32>
    %18 = arith.addf %16, %17 : vector<32x1xf32>
    %19 = tpu.reciprocal %18 {approx = true} : vector<32x1xf32> -> vector<32x1xf32>
    %20 = arith.mulf %18, %19 : vector<32x1xf32>
    %cst_7 = arith.constant 2.000000e+00 : f32
    %21 = vector.broadcast %cst_7 : f32 to vector<32x1xf32>
    %22 = arith.subf %21, %20 : vector<32x1xf32>
    %23 = arith.mulf %19, %22 : vector<32x1xf32>
    %c0_8 = arith.constant 0 : index
    %c0_9 = arith.constant 0 : index
    %24 = vector.load %arg2[%c0_8, %c0_9] : memref<1x128xf32, #tpu.memory_space<vmem>>, vector<1x128xf32>
    %c0_10 = arith.constant 0 : index
    %c0_11 = arith.constant 0 : index
    %25 = vector.load %arg3[%c0_10, %c0_11] : memref<1x128xf32, #tpu.memory_space<vmem>>, vector<1x128xf32>
    %26 = vector.broadcast %7 : vector<32x1xf32> to vector<32x128xf32>
    %27 = arith.subf %0, %26 : vector<32x128xf32>
    %28 = vector.broadcast %23 : vector<32x1xf32> to vector<32x128xf32>
    %29 = arith.mulf %27, %28 : vector<32x128xf32>
    %30 = vector.broadcast %24 : vector<1x128xf32> to vector<32x128xf32>
    %31 = arith.mulf %29, %30 : vector<32x128xf32>
    %32 = vector.broadcast %25 : vector<1x128xf32> to vector<32x128xf32>
    %33 = arith.addf %31, %32 : vector<32x128xf32>
    %c0_12 = arith.constant 0 : index
    %c0_13 = arith.constant 0 : index
    %34 = vector.load %arg4[%c0_12, %c0_13] : memref<32x128xf32, #tpu.memory_space<vmem>>, vector<32x128xf32>
    tpu.vector_store %arg4[%c0_12, %c0_13], %33 {strides = array<i32>} : memref<32x128xf32, #tpu.memory_space<vmem>>, vector<32x128xf32>,
    return
  }
  func.func @transform_0(%arg0: i32) -> (i32, i32) {
    %c0_i32 = arith.constant 0 : i32
    %c0_i32_0 = arith.constant 0 : i32
    return %arg0, %c0_i32 : i32, i32
  }
  func.func @transform_1(%arg0: i32) -> (i32, i32) {
    %c0_i32 = arith.constant 0 : i32
    %c0_i32_0 = arith.constant 0 : i32
    %c0_i32_1 = arith.constant 0 : i32
    return %c0_i32, %c0_i32_0 : i32, i32
  }
  func.func @transform_2(%arg0: i32) -> (i32, i32) {
    %c0_i32 = arith.constant 0 : i32
    %c0_i32_0 = arith.constant 0 : i32
    %c0_i32_1 = arith.constant 0 : i32
    return %c0_i32, %c0_i32_0 : i32, i32
  }
  func.func @transform_3(%arg0: i32) -> (i32, i32) {
    %c0_i32 = arith.constant 0 : i32
    %c0_i32_0 = arith.constant 0 : i32
    return %arg0, %c0_i32 : i32, i32
  }
}

</mosaic_0001>

<llo_original>
// kernel: tpu_custom_call.1
$region0: #{tpu_custom_call.1}
  #allocation0 [shape = 'u32[]', space=smem, size = 0x4, offset = 0x4, fixed_abs, tag = 'smem constant byte address 0x4 - core index']
  #allocation1 [shape = 'u32[144,128]{1,0:T(1,128)}', space=vmem, size = 0x12000, scoped, tag = 'internal scratch']
  %s0 = inlined_call_operand.hbm [shape: f32[32,128], index: 0, kind: input, shape index: {}]
  %s1 = inlined_call_operand.vmem [shape: f32[1,128], index: 1, kind: input, shape index: {}]
  %s2 = inlined_call_operand.vmem [shape: f32[1,128], index: 2, kind: input, shape index: {}]
  %s3 = inlined_call_operand.hbm [shape: f32[32,128], index: 3, kind: output, shape index: {}]
  %s4 = sld [smem:[#allocation0]]
  $region26: #{tpu_custom_call.1} parent=0
    _
  %s6 = ssub.s32 1, %s4
  %s7 = scalar_select 0, %s6, %s4
  $region1: #{tpu_custom_call.1} parent=0
    #allocation2 [shape = 'u8[16384]{0}', space=vmem, size = 0x4000, scoped, tag = 'input window, operand 0, single buffered']
    #allocation3 [shape = 's32[1]{0}', space=sflag, size = 0x4, scoped, tag = 'scoped memory for tpu_custom_call.1']
    #allocation4 [shape = 's32[1]{0}', space=sflag, size = 0x4, scoped, tag = 'scoped memory for tpu_custom_call.1']
    #allocation5 [shape = 'u8[16384]{0}', space=vmem, size = 0x4000, scoped, tag = 'output window, operand 0, single buffered']
    %8 = vsyncpa [#allocation3], 0
    %9 = vsyncpa [#allocation4], 0
    // Predicated region
    $region2: #{tpu_custom_call.1} parent=1 // pred_check
      _
    $region3: #{tpu_custom_call.1} parent=1 // pred_check_branch
      %11 = sbr.rel (0) target = $region5
    $region4: #{tpu_custom_call.1} parent=1 // pred_region
      %s13 = ssub.s32 512, 512
      %14 = vsyncadd [#allocation3], %s13
      %s15 = sshll.u32 [#allocation2], 4
      %s16 = int_to_ptr.vmem [resolvable:$true] %s15
      %21 = dma.hbm_to_vmem [thread:$0]  %s0, 512, %s16, [#allocation3], 128, 128, 8
    $region5: #{tpu_custom_call.1} parent=1 // pred_fallthru
      _
    // Predicated region
    $region6: #{tpu_custom_call.1} parent=1 // pred_check
      _
    $region7: #{tpu_custom_call.1} parent=1 // pred_check_branch
      %23 = sbr.rel (0) target = $region9
    $region8: #{tpu_custom_call.1} parent=1 // pred_region
      _
    $region9: #{tpu_custom_call.1} parent=1 // pred_fallthru
      _
    // Predicated region
    $region10: #{tpu_custom_call.1} parent=1 // pred_check
      _
    $region11: #{tpu_custom_call.1} parent=1 // pred_check_branch
      %25 = sbr.rel (0) target = $region13
    $region12: #{tpu_custom_call.1} parent=1 // pred_region
      _
    $region13: #{tpu_custom_call.1} parent=1 // pred_fallthru
      _
    // Predicated region
    $region14: #{tpu_custom_call.1} parent=1 // pred_check
      _
    $region15: #{tpu_custom_call.1} parent=1 // pred_check_branch
      %27 = sbr.rel (0) target = $region17
    $region16: #{tpu_custom_call.1} parent=1 // pred_region
      %28 = dma.done [#allocation3], 512
    $region17: #{tpu_custom_call.1} parent=1 // pred_fallthru
      _
    %v29 = vld [vmem:[#allocation2] sm:$0xff]
    %v30 = vld [vmem:[#allocation2 + $0x8] sm:$0xff]
    %v31 = vld [vmem:[#allocation2 + $0x10] sm:$0xff]
    %v32 = vld [vmem:[#allocation2 + $0x18] sm:$0xff]
    %33 = vadd.xlane.f32.xlu0 %v29
    %v34 = vpop.xlane.xlu0 %33
    %35 = vadd.xlane.f32.xlu0 %v30
    %v36 = vpop.xlane.xlu0 %35
    %37 = vadd.xlane.f32.xlu0 %v31
    %v38 = vpop.xlane.xlu0 %37
    %39 = vadd.xlane.f32.xlu0 %v32
    %v40 = vpop.xlane.xlu0 %39
    %v41 = vmul.f32 %v29, %v29
    %v42 = vmul.f32 %v30, %v30
    %v43 = vmul.f32 %v31, %v31
    %v44 = vmul.f32 %v32, %v32
    %45 = vadd.xlane.f32.xlu0 %v41
    %v46 = vpop.xlane.xlu0 %45
    %47 = vadd.xlane.f32.xlu0 %v42
    %v48 = vpop.xlane.xlu0 %47
    %49 = vadd.xlane.f32.xlu0 %v43
    %v50 = vpop.xlane.xlu0 %49
    %51 = vadd.xlane.f32.xlu0 %v44
    %v52 = vpop.xlane.xlu0 %51
    %v53 = vmul.f32 %v34, 0.0078125
    %v54 = vmul.f32 %v36, 0.0078125
    %v55 = vmul.f32 %v38, 0.0078125
    %v56 = vmul.f32 %v40, 0.0078125
    %v57 = vmul.f32 %v53, 128.0
    %v58 = vmul.f32 %v54, 128.0
    %v59 = vmul.f32 %v55, 128.0
    %v60 = vmul.f32 %v56, 128.0
    %v61 = vmul.f32 %v57, %v53
    %v62 = vmul.f32 %v58, %v54
    %v63 = vmul.f32 %v59, %v55
    %v64 = vmul.f32 %v60, %v56
    %v65 = vsub.f32 %v46, %v61
    %v66 = vsub.f32 %v48, %v62
    %v67 = vsub.f32 %v50, %v63
    %v68 = vsub.f32 %v52, %v64
    %v69 = vmul.f32 %v65, 0.007874016
    %v70 = vmul.f32 %v66, 0.007874016
    %v71 = vmul.f32 %v67, 0.007874016
    %v72 = vmul.f32 %v68, 0.007874016
    %v73 = vmax.f32 %v69, 0.0
    %v74 = vmax.f32 %v70, 0.0
    %v75 = vmax.f32 %v71, 0.0
    %v76 = vmax.f32 %v72, 0.0
    %v77 = vrsqrt.pop %v73
    %v78 = vmul.f32 %v73, %v77
    %vm79 = vcmp.eq.f32.partialorder %v73, inf
    %v80 = vsel %vm79, %v73, %v78
    %vm81 = vcmp.eq.f32.partialorder %v73, 0.0
    %v82 = vand.u32 %v73, 2147483648
    %v83 = vsel %vm81, %v82, %v80
    %v84 = vrsqrt.pop %v74
    %v85 = vmul.f32 %v74, %v84
    %vm86 = vcmp.eq.f32.partialorder %v74, inf
    %v87 = vsel %vm86, %v74, %v85
    %vm88 = vcmp.eq.f32.partialorder %v74, 0.0
    %v89 = vand.u32 %v74, 2147483648
    %v90 = vsel %vm88, %v89, %v87
    %v91 = vrsqrt.pop %v75
    %v92 = vmul.f32 %v75, %v91
    %vm93 = vcmp.eq.f32.partialorder %v75, inf
    %v94 = vsel %vm93, %v75, %v92
    %vm95 = vcmp.eq.f32.partialorder %v75, 0.0
    %v96 = vand.u32 %v75, 2147483648
    %v97 = vsel %vm95, %v96, %v94
    %v98 = vrsqrt.pop %v76
    %v99 = vmul.f32 %v76, %v98
    %vm100 = vcmp.eq.f32.partialorder %v76, inf
    %v101 = vsel %vm100, %v76, %v99
    %vm102 = vcmp.eq.f32.partialorder %v76, 0.0
    %v103 = vand.u32 %v76, 2147483648
    %v104 = vsel %vm102, %v103, %v101
    %v105 = vadd.f32 %v83, 1e-06
    %v106 = vadd.f32 %v90, 1e-06
    %v107 = vadd.f32 %v97, 1e-06
    %v108 = vadd.f32 %v104, 1e-06
    %v109 = vrcp.pop %v105
    %v110 = vrcp.pop %v106
    %v111 = vrcp.pop %v107
    %v112 = vrcp.pop %v108
    %v113 = vmul.f32 %v105, %v109
    %v114 = vmul.f32 %v106, %v110
    %v115 = vmul.f32 %v107, %v111
    %v116 = vmul.f32 %v108, %v112
    %v117 = vsub.f32 2.0, %v113
    %v118 = vsub.f32 2.0, %v114
    %v119 = vsub.f32 2.0, %v115
    %v120 = vsub.f32 2.0, %v116
    %v121 = vmul.f32 %v109, %v117
    %v122 = vmul.f32 %v110, %v118
    %v123 = vmul.f32 %v111, %v119
    %v124 = vmul.f32 %v112, %v120
    %v125 = vld [vmem:[%s1] sm:$0x1]
    %v126 = vld [vmem:[%s2] sm:$0x1]
    %v127 = vsub.f32 %v29, %v53
    %v128 = vsub.f32 %v30, %v54
    %v129 = vsub.f32 %v31, %v55
    %v130 = vsub.f32 %v32, %v56
    %v131 = vmul.f32 %v127, %v121
    %v132 = vmul.f32 %v128, %v122
    %v133 = vmul.f32 %v129, %v123
    %v134 = vmul.f32 %v130, %v124
    %v136 = vlaneseq
    %v137 = vshrl.u32 %v136, 7
    %v138 = vsub.s32 0, %v137
    %v139 = vrot.slane %v125, %v138
    %v141 = vmul.f32 %v131, %v139
    %v142 = vmul.f32 %v132, %v139
    %v143 = vmul.f32 %v133, %v139
    %v144 = vmul.f32 %v134, %v139
    %v146 = vlaneseq
    %v147 = vshrl.u32 %v146, 7
    %v148 = vsub.s32 0, %v147
    %v149 = vrot.slane %v126, %v148
    %v151 = vadd.f32 %v141, %v149
    %v152 = vadd.f32 %v142, %v149
    %v153 = vadd.f32 %v143, %v149
    %v154 = vadd.f32 %v144, %v149
    %155 = vst [vmem:[#allocation5] sm:$0xff] %v151
    %156 = vst [vmem:[#allocation5 + $0x8] sm:$0xff] %v152
    %157 = vst [vmem:[#allocation5 + $0x10] sm:$0xff] %v153
    %158 = vst [vmem:[#allocation5 + $0x18] sm:$0xff] %v154
    // Predicated region
    $region18: #{tpu_custom_call.1} parent=1 // pred_check
      _
    $region19: #{tpu_custom_call.1} parent=1 // pred_check_branch
      %160 = sbr.rel (0) target = $region21
    $region20: #{tpu_custom_call.1} parent=1 // pred_region
      %s162 = ssub.s32 512, 512
      %163 = vsyncadd [#allocation4], %s162
      %s164 = sshll.u32 [#allocation5], 4
      %s165 = int_to_ptr.vmem [resolvable:$true] %s164
      %170 = dma.vmem_to_hbm [thread:$0]  %s165, 512, %s3, [#allocation4], 128, 128, 8
    $region21: #{tpu_custom_call.1} parent=1 // pred_fallthru
      _
    // Predicated region
    $region22: #{tpu_custom_call.1} parent=1 // pred_check
      _
    $region23: #{tpu_custom_call.1} parent=1 // pred_check_branch
      %172 = sbr.rel (0) target = $region25
    $region24: #{tpu_custom_call.1} parent=1 // pred_region
      %173 = dma.done [#allocation4], 512
    $region25: #{tpu_custom_call.1} parent=1 // pred_fallthru
      _
    %174 = vsyncpa [#allocation3], 1
    %175 = vsyncpa [#allocation4], 1

</llo_original>
